<compile_context>
chip_gen: v6e
topology: v6e:2x2x1
jax: 0.10.0
libtpu: 0.0.40
codegen_flags: <defaults>
</compile_context>

<pallas_src>
import functools

import jax
import jax.numpy as jnp
from jax.experimental import pallas as pl
from jax.experimental.pallas import tpu as pltpu


def _round_up(x: int, m: int) -> int:
    return ((x + m - 1) // m) * m


def _choose_tiles(n: int):
    """Return (n_pad, tm, tk) such that tm | n_pad and tk | n_pad."""
    if n <= 512:
        n_pad = _round_up(n, 128)
        return n_pad, n_pad, n_pad
    n_pad = _round_up(n, 512)
    return n_pad, 256, 512


# ---------------------------------------------------------------------------
# Pallas kernel: one (row-tile i, k-tile) step of
#   next = A @ cur ;  acc_out = acc_in + next
# ---------------------------------------------------------------------------
def _layer_kernel(adj_ref, cur_ref, acc_ref, next_ref, acc_out_ref, msum_ref):
    k = pl.program_id(1)

    @pl.when(k == 0)
    def _():
        msum_ref[...] = jnp.zeros_like(msum_ref)

    # A tile is streamed from HBM as bf16 (bandwidth-bound); accumulate in f32.
    msum_ref[...] += jnp.dot(
        adj_ref[...].astype(jnp.float32),
        cur_ref[...],
        preferred_element_type=jnp.float32,
    )

    @pl.when(k == pl.num_programs(1) - 1)
    def _():
        nxt = msum_ref[...]
        next_ref[...] = nxt
        acc_out_ref[...] = acc_ref[...] + nxt


def _propagate_one_layer(adj_bf16, cur, acc, *, tm: int, tk: int):
    n_pad, d_pad = cur.shape
    grid = (n_pad // tm, n_pad // tk)

    flops = int(2 * n_pad * n_pad * d_pad)
    bytes_accessed = int(
        n_pad * n_pad * 2                       # adjacency (bf16), dominant
        + (n_pad // tm) * n_pad * d_pad * 4     # cur streamed once per row tile
        + 3 * n_pad * d_pad * 4                 # acc read + next/acc writes
    )

    nxt, acc_out = pl.pallas_call(
        _layer_kernel,
        out_shape=(
            jax.ShapeDtypeStruct((n_pad, d_pad), jnp.float32),
            jax.ShapeDtypeStruct((n_pad, d_pad), jnp.float32),
        ),
        grid=grid,
        in_specs=[
            pl.BlockSpec((tm, tk), lambda i, k: (i, k)),      # adjacency tile (bf16)
            pl.BlockSpec((tk, d_pad), lambda i, k: (k, 0)),   # current embeddings
            pl.BlockSpec((tm, d_pad), lambda i, k: (i, 0)),   # running layer sum (in)
        ],
        out_specs=(
            pl.BlockSpec((tm, d_pad), lambda i, k: (i, 0)),   # next-layer embeddings
            pl.BlockSpec((tm, d_pad), lambda i, k: (i, 0)),   # running layer sum (out)
        ),
        scratch_shapes=[pltpu.VMEM((tm, d_pad), jnp.float32)],
        compiler_params=pltpu.CompilerParams(
            dimension_semantics=("parallel", "arbitrary"),
            vmem_limit_bytes=32 * 1024 * 1024,
        ),
        cost_estimate=pl.CostEstimate(
            flops=flops, transcendentals=0, bytes_accessed=bytes_accessed
        ),
    )(adj_bf16, cur, acc)
    return nxt, acc_out


# ---------------------------------------------------------------------------
# Plain-JAX glue: normalized adjacency + full forward (mirrors LightGCNEncoder)
# ---------------------------------------------------------------------------
def build_normalized_adj(edge_index, num_users: int, num_items: int):
    """edge_index: (2, E) int32, row = user idx, col = item idx + num_users.
    Returns dense symmetric D^{-1/2} A D^{-1/2} of shape (N, N), f32."""
    n = num_users + num_items
    row, col = edge_index[0], edge_index[1]
    adj = jnp.zeros((n, n), dtype=jnp.float32)
    adj = adj.at[row, col].set(1.0)   # coalesced binary adjacency
    adj = adj.at[col, row].set(1.0)   # to_symmetric
    deg = adj.sum(axis=1)
    deg_inv_sqrt = jnp.where(deg > 0, 1.0 / jnp.sqrt(deg), 0.0)
    return deg_inv_sqrt[:, None] * adj * deg_inv_sqrt[None, :]


@functools.partial(jax.jit, static_argnums=(3,))
def lightgcn_forward(user_emb, item_emb, edge_index, num_layers):
    num_users, d = user_emb.shape
    num_items, _ = item_emb.shape
    n = num_users + num_items

    adj = build_normalized_adj(edge_index, num_users, num_items)
    emb0 = jnp.concatenate([user_emb, item_emb], axis=0)

    n_pad, tm, tk = _choose_tiles(n)
    d_pad = _round_up(d, 128)  # lane-dense output stores

    adj_bf16 = jnp.pad(adj, ((0, n_pad - n), (0, n_pad - n))).astype(jnp.bfloat16)
    cur = jnp.pad(emb0, ((0, n_pad - n), (0, d_pad - d))).astype(jnp.float32)
    acc = cur  # layer-0 term of the mean

    for _ in range(num_layers):
        cur, acc = _propagate_one_layer(adj_bf16, cur, acc, tm=tm, tk=tk)

    final = acc[:n, :d] * (1.0 / float(num_layers + 1))
    return final[:num_users], final[num_users:]


# ---------------------------------------------------------------------------
# Pure-JAX references for correctness checking
# ---------------------------------------------------------------------------
def lightgcn_reference(user_emb, item_emb, edge_index, num_layers,
                       adj_dtype=jnp.float32):
    num_users = user_emb.shape[0]
    num_items = item_emb.shape[0]
    adj = build_normalized_adj(edge_index, num_users, num_items)
    adj = adj.astype(adj_dtype).astype(jnp.float32)
    emb = jnp.concatenate([user_emb, item_emb], axis=0)
    acc = emb
    cur = emb
    for _ in range(num_layers):
        cur = jnp.matmul(adj, cur, precision=jax.lax.Precision.HIGHEST)
        acc = acc + cur
    final = acc / (num_layers + 1)
    return final[:num_users], final[num_users:]


if __name__ == "__main__":
    # Small, deterministic synthetic setup consistent with LightGCNEncoder.__init__
    num_users = 48
    num_items = 80
    embedding_dim = 64
    num_layers = 3
    num_edges = 300

    key = jax.random.PRNGKey(0)
    k_u, k_i, k_eu, k_ei = jax.random.split(key, 4)

    # nn.init.normal_(weight, std=0.1)
    user_emb = 0.1 * jax.random.normal(k_eu, (num_users, embedding_dim), jnp.float32)
    item_emb = 0.1 * jax.random.normal(k_ei, (num_items, embedding_dim), jnp.float32)

    # Random user->item interaction edges; item indices offset by num_users,
    # matching LightGCNModel._get_edge_index.
    users = jax.random.randint(k_u, (num_edges,), 0, num_users, jnp.int32)
    items = jax.random.randint(k_i, (num_edges,), 0, num_items, jnp.int32) + num_users
    edge_index = jnp.stack([users, items], axis=0)  # (2, E)

    u_out, i_out = lightgcn_forward(user_emb, item_emb, edge_index, num_layers)
    u_out = jax.block_until_ready(u_out)
    i_out = jax.block_until_ready(i_out)

    assert u_out.shape == (num_users, embedding_dim)
    assert i_out.shape == (num_items, embedding_dim)

    # Tight check: same bf16-rounded adjacency, f32 accumulation.
    u_ref_b, i_ref_b = lightgcn_reference(user_emb, item_emb, edge_index,
                                          num_layers, adj_dtype=jnp.bfloat16)
    assert jnp.allclose(u_out, u_ref_b, atol=1e-4, rtol=1e-3)
    assert jnp.allclose(i_out, i_ref_b, atol=1e-4, rtol=1e-3)

    # Loose check vs. the full-f32 semantics of the PyTorch module
    # (bf16 adjacency introduces ~1e-3 relative error).
    u_ref, i_ref = lightgcn_reference(user_emb, item_emb, edge_index, num_layers)
    assert jnp.allclose(u_out, u_ref, atol=2e-3, rtol=3e-2)
    assert jnp.allclose(i_out, i_ref, atol=2e-3, rtol=3e-2)

    print("KERNEL_OK")
</pallas_src>

<mosaic_0001>
module attributes {stable_mosaic.version = 11 : i64} {
  func.func @_layer_kernel(%arg0: i32, %arg1: i32, %arg2: memref<128x128xbf16, #tpu.memory_space<vmem>>, %arg3: memref<128x128xf32, #tpu.memory_space<vmem>>, %arg4: memref<128x128xf32, #tpu.memory_space<vmem>>, %arg5: memref<128x128xf32, #tpu.memory_space<vmem>>, %arg6: memref<128x128xf32, #tpu.memory_space<vmem>>, %arg7: memref<128x128xf32, #tpu.memory_space<vmem>>) attributes {dimension_semantics = [#tpu.dimension_semantics<parallel>, #tpu.dimension_semantics<arbitrary>], iteration_bounds = array<i64: 1, 1>, scalar_prefetch = 0 : i64, scratch_operands = 1 : i64, tpu.core_type = #tpu.core_type<tc>, window_params = [{transform_indices = @transform_0, window_bounds = array<i64: 128, 128>}, {transform_indices = @transform_1, window_bounds = array<i64: 128, 128>}, {transform_indices = @transform_2, window_bounds = array<i64: 128, 128>}, {transform_indices = @transform_3, window_bounds = array<i64: 128, 128>}, {transform_indices = @transform_4, window_bounds = array<i64: 128, 128>}]} {
    %c0_i32 = arith.constant 0 : i32
    %0 = arith.cmpi eq, %arg1, %c0_i32 : i32
    %1 = arith.extui %0 : i1 to i32
    %c0_i32_0 = arith.constant 0 : i32
    %2 = arith.cmpi ne, %1, %c0_i32_0 : i32
    scf.if %2 {
      %cst_10 = arith.constant 0.000000e+00 : f32
      %13 = vector.broadcast %cst_10 : f32 to vector<128x128xf32>
      %c0_11 = arith.constant 0 : index
      %c0_12 = arith.constant 0 : index
      %14 = vector.load %arg7[%c0_11, %c0_12] : memref<128x128xf32, #tpu.memory_space<vmem>>, vector<128x128xf32>
      tpu.vector_store %arg7[%c0_11, %c0_12], %13 {strides = array<i32>} : memref<128x128xf32, #tpu.memory_space<vmem>>, vector<128x128xf32>,
    } else {
    }
    %c0 = arith.constant 0 : index
    %c0_1 = arith.constant 0 : index
    %3 = vector.load %arg7[%c0, %c0_1] : memref<128x128xf32, #tpu.memory_space<vmem>>, vector<128x128xf32>
    %c0_2 = arith.constant 0 : index
    %c0_3 = arith.constant 0 : index
    %4 = vector.load %arg2[%c0_2, %c0_3] : memref<128x128xbf16, #tpu.memory_space<vmem>>, vector<128x128xbf16>
    %5 = arith.extf %4 : vector<128x128xbf16> to vector<128x128xf32>
    %c0_4 = arith.constant 0 : index
    %c0_5 = arith.constant 0 : index
    %6 = vector.load %arg3[%c0_4, %c0_5] : memref<128x128xf32, #tpu.memory_space<vmem>>, vector<128x128xf32>
    %cst = arith.constant dense<0.000000e+00> : vector<128x128xf32>
    %7 = tpu.matmul %5, %6, %cst {dimension_numbers = #tpu.dot_dimension_numbers<[1], [0], [0], [1], [0, 0, 1, 1], [], []>} : vector<128x128xf32>, vector<128x128xf32>, vector<128x128xf32> -> vector<128x128xf32>
    %8 = arith.addf %3, %7 : vector<128x128xf32>
    %c0_6 = arith.constant 0 : index
    %c0_7 = arith.constant 0 : index
    %9 = vector.load %arg7[%c0_6, %c0_7] : memref<128x128xf32, #tpu.memory_space<vmem>>, vector<128x128xf32>
    tpu.vector_store %arg7[%c0_6, %c0_7], %8 {strides = array<i32>} : memref<128x128xf32, #tpu.memory_space<vmem>>, vector<128x128xf32>,
    %c0_i32_8 = arith.constant 0 : i32
    %10 = arith.cmpi eq, %arg1, %c0_i32_8 : i32
    %11 = arith.extui %10 : i1 to i32
    %c0_i32_9 = arith.constant 0 : i32
    %12 = arith.cmpi ne, %11, %c0_i32_9 : i32
    scf.if %12 {
      %c0_10 = arith.constant 0 : index
      %c0_11 = arith.constant 0 : index
      %13 = vector.load %arg7[%c0_10, %c0_11] : memref<128x128xf32, #tpu.memory_space<vmem>>, vector<128x128xf32>
      %c0_12 = arith.constant 0 : index
      %c0_13 = arith.constant 0 : index
      %14 = vector.load %arg5[%c0_12, %c0_13] : memref<128x128xf32, #tpu.memory_space<vmem>>, vector<128x128xf32>
      tpu.vector_store %arg5[%c0_12, %c0_13], %13 {strides = array<i32>} : memref<128x128xf32, #tpu.memory_space<vmem>>, vector<128x128xf32>,
      %c0_14 = arith.constant 0 : index
      %c0_15 = arith.constant 0 : index
      %15 = vector.load %arg4[%c0_14, %c0_15] : memref<128x128xf32, #tpu.memory_space<vmem>>, vector<128x128xf32>
      %16 = arith.addf %15, %13 : vector<128x128xf32>
      %c0_16 = arith.constant 0 : index
      %c0_17 = arith.constant 0 : index
      %17 = vector.load %arg6[%c0_16, %c0_17] : memref<128x128xf32, #tpu.memory_space<vmem>>, vector<128x128xf32>
      tpu.vector_store %arg6[%c0_16, %c0_17], %16 {strides = array<i32>} : memref<128x128xf32, #tpu.memory_space<vmem>>, vector<128x128xf32>,
    } else {
    }
    return
  }
  func.func @transform_0(%arg0: i32, %arg1: i32) -> (i32, i32) {
    %c0_i32 = arith.constant 0 : i32
    return %arg0, %arg1 : i32, i32
  }
  func.func @transform_1(%arg0: i32, %arg1: i32) -> (i32, i32) {
    %c0_i32 = arith.constant 0 : i32
    %c0_i32_0 = arith.constant 0 : i32
    return %arg1, %c0_i32 : i32, i32
  }
  func.func @transform_2(%arg0: i32, %arg1: i32) -> (i32, i32) {
    %c0_i32 = arith.constant 0 : i32
    %c0_i32_0 = arith.constant 0 : i32
    return %arg0, %c0_i32 : i32, i32
  }
  func.func @transform_3(%arg0: i32, %arg1: i32) -> (i32, i32) {
    %c0_i32 = arith.constant 0 : i32
    %c0_i32_0 = arith.constant 0 : i32
    return %arg0, %c0_i32 : i32, i32
  }
  func.func @transform_4(%arg0: i32, %arg1: i32) -> (i32, i32) {
    %c0_i32 = arith.constant 0 : i32
    %c0_i32_0 = arith.constant 0 : i32
    return %arg0, %c0_i32 : i32, i32
  }
}

module attributes {stable_mosaic.version = 11 : i64} {
  func.func @_layer_kernel(%arg0: i32, %arg1: i32, %arg2: memref<128x128xbf16, #tpu.memory_space<vmem>>, %arg3: memref<128x128xf32, #tpu.memory_space<vmem>>, %arg4: memref<128x128xf32, #tpu.memory_space<vmem>>, %arg5: memref<128x128xf32, #tpu.memory_space<vmem>>, %arg6: memref<128x128xf32, #tpu.memory_space<vmem>>, %arg7: memref<128x128xf32, #tpu.memory_space<vmem>>) attributes {dimension_semantics = [#tpu.dimension_semantics<parallel>, #tpu.dimension_semantics<arbitrary>], iteration_bounds = array<i64: 1, 1>, scalar_prefetch = 0 : i64, scratch_operands = 1 : i64, tpu.core_type = #tpu.core_type<tc>, window_params = [{transform_indices = @transform_0, window_bounds = array<i64: 128, 128>}, {transform_indices = @transform_1, window_bounds = array<i64: 128, 128>}, {transform_indices = @transform_2, window_bounds = array<i64: 128, 128>}, {transform_indices = @transform_3, window_bounds = array<i64: 128, 128>}, {transform_indices = @transform_4, window_bounds = array<i64: 128, 128>}]} {
    %c0_i32 = arith.constant 0 : i32
    %0 = arith.cmpi eq, %arg1, %c0_i32 : i32
    %1 = arith.extui %0 : i1 to i32
    %c0_i32_0 = arith.constant 0 : i32
    %2 = arith.cmpi ne, %1, %c0_i32_0 : i32
    scf.if %2 {
      %cst_10 = arith.constant 0.000000e+00 : f32
      %13 = vector.broadcast %cst_10 : f32 to vector<128x128xf32>
      %c0_11 = arith.constant 0 : index
      %c0_12 = arith.constant 0 : index
      %14 = vector.load %arg7[%c0_11, %c0_12] : memref<128x128xf32, #tpu.memory_space<vmem>>, vector<128x128xf32>
      tpu.vector_store %arg7[%c0_11, %c0_12], %13 {strides = array<i32>} : memref<128x128xf32, #tpu.memory_space<vmem>>, vector<128x128xf32>,
    } else {
    }
    %c0 = arith.constant 0 : index
    %c0_1 = arith.constant 0 : index
    %3 = vector.load %arg7[%c0, %c0_1] : memref<128x128xf32, #tpu.memory_space<vmem>>, vector<128x128xf32>
    %c0_2 = arith.constant 0 : index
    %c0_3 = arith.constant 0 : index
    %4 = vector.load %arg2[%c0_2, %c0_3] : memref<128x128xbf16, #tpu.memory_space<vmem>>, vector<128x128xbf16>
    %5 = arith.extf %4 : vector<128x128xbf16> to vector<128x128xf32>
    %c0_4 = arith.constant 0 : index
    %c0_5 = arith.constant 0 : index
    %6 = vector.load %arg3[%c0_4, %c0_5] : memref<128x128xf32, #tpu.memory_space<vmem>>, vector<128x128xf32>
    %cst = arith.constant dense<0.000000e+00> : vector<128x128xf32>
    %7 = tpu.matmul %5, %6, %cst {dimension_numbers = #tpu.dot_dimension_numbers<[1], [0], [0], [1], [0, 0, 1, 1], [], []>} : vector<128x128xf32>, vector<128x128xf32>, vector<128x128xf32> -> vector<128x128xf32>
    %8 = arith.addf %3, %7 : vector<128x128xf32>
    %c0_6 = arith.constant 0 : index
    %c0_7 = arith.constant 0 : index
    %9 = vector.load %arg7[%c0_6, %c0_7] : memref<128x128xf32, #tpu.memory_space<vmem>>, vector<128x128xf32>
    tpu.vector_store %arg7[%c0_6, %c0_7], %8 {strides = array<i32>} : memref<128x128xf32, #tpu.memory_space<vmem>>, vector<128x128xf32>,
    %c0_i32_8 = arith.constant 0 : i32
    %10 = arith.cmpi eq, %arg1, %c0_i32_8 : i32
    %11 = arith.extui %10 : i1 to i32
    %c0_i32_9 = arith.constant 0 : i32
    %12 = arith.cmpi ne, %11, %c0_i32_9 : i32
    scf.if %12 {
      %c0_10 = arith.constant 0 : index
      %c0_11 = arith.constant 0 : index
      %13 = vector.load %arg7[%c0_10, %c0_11] : memref<128x128xf32, #tpu.memory_space<vmem>>, vector<128x128xf32>
      %c0_12 = arith.constant 0 : index
      %c0_13 = arith.constant 0 : index
      %14 = vector.load %arg5[%c0_12, %c0_13] : memref<128x128xf32, #tpu.memory_space<vmem>>, vector<128x128xf32>
      tpu.vector_store %arg5[%c0_12, %c0_13], %13 {strides = array<i32>} : memref<128x128xf32, #tpu.memory_space<vmem>>, vector<128x128xf32>,
      %c0_14 = arith.constant 0 : index
      %c0_15 = arith.constant 0 : index
      %15 = vector.load %arg4[%c0_14, %c0_15] : memref<128x128xf32, #tpu.memory_space<vmem>>, vector<128x128xf32>
      %16 = arith.addf %15, %13 : vector<128x128xf32>
      %c0_16 = arith.constant 0 : index
      %c0_17 = arith.constant 0 : index
      %17 = vector.load %arg6[%c0_16, %c0_17] : memref<128x128xf32, #tpu.memory_space<vmem>>, vector<128x128xf32>
      tpu.vector_store %arg6[%c0_16, %c0_17], %16 {strides = array<i32>} : memref<128x128xf32, #tpu.memory_space<vmem>>, vector<128x128xf32>,
    } else {
    }
    return
  }
  func.func @transform_0(%arg0: i32, %arg1: i32) -> (i32, i32) {
    %c0_i32 = arith.constant 0 : i32
    return %arg0, %arg1 : i32, i32
  }
  func.func @transform_1(%arg0: i32, %arg1: i32) -> (i32, i32) {
    %c0_i32 = arith.constant 0 : i32
    %c0_i32_0 = arith.constant 0 : i32
    return %arg1, %c0_i32 : i32, i32
  }
  func.func @transform_2(%arg0: i32, %arg1: i32) -> (i32, i32) {
    %c0_i32 = arith.constant 0 : i32
    %c0_i32_0 = arith.constant 0 : i32
    return %arg0, %c0_i32 : i32, i32
  }
  func.func @transform_3(%arg0: i32, %arg1: i32) -> (i32, i32) {
    %c0_i32 = arith.constant 0 : i32
    %c0_i32_0 = arith.constant 0 : i32
    return %arg0, %c0_i32 : i32, i32
  }
  func.func @transform_4(%arg0: i32, %arg1: i32) -> (i32, i32) {
    %c0_i32 = arith.constant 0 : i32
    %c0_i32_0 = arith.constant 0 : i32
    return %arg0, %c0_i32 : i32, i32
  }
}

</mosaic_0001>

<llo_original>
// kernel: lightgcn_forward.5
$region0: #{lightgcn_forward.5}
  #allocation0 [shape = 'u32[]', space=smem, size = 0x4, offset = 0x4, fixed_abs, tag = 'smem constant byte address 0x4 - core index']
  #allocation1 [shape = 'u32[144,128]{1,0:T(1,128)}', space=vmem, size = 0x12000, scoped, tag = 'internal scratch']
  #allocation2 [shape = 'f32[128,128]{1,0:T(8,128)}', space=vmem, size = 0x10000, scoped, tag = 'scratch operand']
  %s0 = inlined_call_operand.vmem [shape: bf16[128,128], index: 0, kind: input, shape index: {}]
  %s1 = inlined_call_operand.vmem [shape: f32[128,128], index: 1, kind: input, shape index: {}]
  %s2 = inlined_call_operand.vmem [shape: f32[128,128], index: 2, kind: input, shape index: {}]
  %s3 = inlined_call_operand.hbm [shape: f32[128,128], index: 3, kind: output, shape index: {0}]
  %s4 = inlined_call_operand.vmem [shape: f32[128,128], index: 4, kind: output, shape index: {1}]
  %5 = xla_tuple %s3, %s4
  %s6 = sld [smem:[#allocation0]]
  $region38: #{lightgcn_forward.5} parent=0
    _
  %s8 = ssub.s32 1, %s6
  %s9 = scalar_select 0, %s8, %s6
  $region1: #{lightgcn_forward.5} parent=0
    #allocation3 [shape = 'u8[65536]{0}', space=vmem, size = 0x10000, scoped, tag = 'output window, operand 0, single buffered']
    #allocation4 [shape = 's32[1]{0}', space=sflag, size = 0x4, scoped, tag = 'scoped memory for lightgcn_forward.5']
    %10 = vsyncpa [#allocation4], 0
    // Predicated region
    $region2: #{lightgcn_forward.5} parent=1 // pred_check
      _
    $region3: #{lightgcn_forward.5} parent=1 // pred_check_branch
      %12 = sbr.rel (0) target = $region5
    $region4: #{lightgcn_forward.5} parent=1 // pred_region
      _
    $region5: #{lightgcn_forward.5} parent=1 // pred_fallthru
      _
    // Predicated region
    $region6: #{lightgcn_forward.5} parent=1 // pred_check
      _
    $region7: #{lightgcn_forward.5} parent=1 // pred_check_branch
      %14 = sbr.rel (0) target = $region9
    $region8: #{lightgcn_forward.5} parent=1 // pred_region
      _
    $region9: #{lightgcn_forward.5} parent=1 // pred_fallthru
      _
    // Predicated region
    $region10: #{lightgcn_forward.5} parent=1 // pred_check
      _
    $region11: #{lightgcn_forward.5} parent=1 // pred_check_branch
      %16 = sbr.rel (0) target = $region13
    $region12: #{lightgcn_forward.5} parent=1 // pred_region
      _
    $region13: #{lightgcn_forward.5} parent=1 // pred_fallthru
      _
    %p17 = scmp.eq.s32.totalorder 0, 0
    // Predicated region
    $region14: #{lightgcn_forward.5} parent=1 // pred_check
      %p18 = pneg %p17
    $region15: #{lightgcn_forward.5} parent=1 // pred_check_branch
      %20 = sbr.rel (%p18) target = $region17
    $region16: #{lightgcn_forward.5} parent=1 // pred_region
      %21 = vst [vmem:[#allocation2] sm:$0xff] 0.0
      %22 = vst [vmem:[#allocation2 + $0x8] sm:$0xff] 0.0
      %23 = vst [vmem:[#allocation2 + $0x10] sm:$0xff] 0.0
      %24 = vst [vmem:[#allocation2 + $0x18] sm:$0xff] 0.0
      %25 = vst [vmem:[#allocation2 + $0x20] sm:$0xff] 0.0
      %26 = vst [vmem:[#allocation2 + $0x28] sm:$0xff] 0.0
      %27 = vst [vmem:[#allocation2 + $0x30] sm:$0xff] 0.0
      %28 = vst [vmem:[#allocation2 + $0x38] sm:$0xff] 0.0
      %29 = vst [vmem:[#allocation2 + $0x40] sm:$0xff] 0.0
      %30 = vst [vmem:[#allocation2 + $0x48] sm:$0xff] 0.0
      %31 = vst [vmem:[#allocation2 + $0x50] sm:$0xff] 0.0
      %32 = vst [vmem:[#allocation2 + $0x58] sm:$0xff] 0.0
      %33 = vst [vmem:[#allocation2 + $0x60] sm:$0xff] 0.0
      %34 = vst [vmem:[#allocation2 + $0x68] sm:$0xff] 0.0
      %35 = vst [vmem:[#allocation2 + $0x70] sm:$0xff] 0.0
      %36 = vst [vmem:[#allocation2 + $0x78] sm:$0xff] 0.0
    $region17: #{lightgcn_forward.5} parent=1 // pred_fallthru
      _
    %v37 = vld [vmem:[#allocation2] sm:$0xff]
    %v38 = vld [vmem:[#allocation2 + $0x8] sm:$0xff]
    %v39 = vld [vmem:[#allocation2 + $0x10] sm:$0xff]
    %v40 = vld [vmem:[#allocation2 + $0x18] sm:$0xff]
    %v41 = vld [vmem:[#allocation2 + $0x20] sm:$0xff]
    %v42 = vld [vmem:[#allocation2 + $0x28] sm:$0xff]
    %v43 = vld [vmem:[#allocation2 + $0x30] sm:$0xff]
    %v44 = vld [vmem:[#allocation2 + $0x38] sm:$0xff]
    %v45 = vld [vmem:[#allocation2 + $0x40] sm:$0xff]
    %v46 = vld [vmem:[#allocation2 + $0x48] sm:$0xff]
    %v47 = vld [vmem:[#allocation2 + $0x50] sm:$0xff]
    %v48 = vld [vmem:[#allocation2 + $0x58] sm:$0xff]
    %v49 = vld [vmem:[#allocation2 + $0x60] sm:$0xff]
    %v50 = vld [vmem:[#allocation2 + $0x68] sm:$0xff]
    %v51 = vld [vmem:[#allocation2 + $0x70] sm:$0xff]
    %v52 = vld [vmem:[#allocation2 + $0x78] sm:$0xff]
    %v53 = vld [vmem:[%s0] sm:$0xf]
    %v54 = vld [vmem:[%s0 + $0x4] sm:$0xf]
    %v55 = vld [vmem:[%s0 + $0x8] sm:$0xf]
    %v56 = vld [vmem:[%s0 + $0xc] sm:$0xf]
    %v57 = vld [vmem:[%s0 + $0x10] sm:$0xf]
    %v58 = vld [vmem:[%s0 + $0x14] sm:$0xf]
    %v59 = vld [vmem:[%s0 + $0x18] sm:$0xf]
    %v60 = vld [vmem:[%s0 + $0x1c] sm:$0xf]
    %v61 = vld [vmem:[%s0 + $0x20] sm:$0xf]
    %v62 = vld [vmem:[%s0 + $0x24] sm:$0xf]
    %v63 = vld [vmem:[%s0 + $0x28] sm:$0xf]
    %v64 = vld [vmem:[%s0 + $0x2c] sm:$0xf]
    %v65 = vld [vmem:[%s0 + $0x30] sm:$0xf]
    %v66 = vld [vmem:[%s0 + $0x34] sm:$0xf]
    %v67 = vld [vmem:[%s0 + $0x38] sm:$0xf]
    %v68 = vld [vmem:[%s0 + $0x3c] sm:$0xf]
    %v69 = vunpack.c.l.bf16 %v53
    %v70 = vunpack.c.l.bf16 %v54
    %v71 = vunpack.c.l.bf16 %v55
    %v72 = vunpack.c.l.bf16 %v56
    %v73 = vunpack.c.l.bf16 %v57
    %v74 = vunpack.c.l.bf16 %v58
    %v75 = vunpack.c.l.bf16 %v59
    %v76 = vunpack.c.l.bf16 %v60
    %v77 = vunpack.c.l.bf16 %v61
    %v78 = vunpack.c.l.bf16 %v62
    %v79 = vunpack.c.l.bf16 %v63
    %v80 = vunpack.c.l.bf16 %v64
    %v81 = vunpack.c.l.bf16 %v65
    %v82 = vunpack.c.l.bf16 %v66
    %v83 = vunpack.c.l.bf16 %v67
    %v84 = vunpack.c.l.bf16 %v68
    %v85 = vld [vmem:[%s1] sm:$0xff]
    %v86 = vld [vmem:[%s1 + $0x8] sm:$0xff]
    %v87 = vld [vmem:[%s1 + $0x10] sm:$0xff]
    %v88 = vld [vmem:[%s1 + $0x18] sm:$0xff]
    %v89 = vld [vmem:[%s1 + $0x20] sm:$0xff]
    %v90 = vld [vmem:[%s1 + $0x28] sm:$0xff]
    %v91 = vld [vmem:[%s1 + $0x30] sm:$0xff]
    %v92 = vld [vmem:[%s1 + $0x38] sm:$0xff]
    %v93 = vld [vmem:[%s1 + $0x40] sm:$0xff]
    %v94 = vld [vmem:[%s1 + $0x48] sm:$0xff]
    %v95 = vld [vmem:[%s1 + $0x50] sm:$0xff]
    %v96 = vld [vmem:[%s1 + $0x58] sm:$0xff]
    %v97 = vld [vmem:[%s1 + $0x60] sm:$0xff]
    %v98 = vld [vmem:[%s1 + $0x68] sm:$0xff]
    %v99 = vld [vmem:[%s1 + $0x70] sm:$0xff]
    %v100 = vld [vmem:[%s1 + $0x78] sm:$0xff]
    %101 = vmatprep.subr.mxu0 0.0
    %102 = vmatpush1.msra.mxu0 %v100
    %103 = vmatprep.subr.mxu0 0.0
    %104 = vmatpush1.msra.mxu0 %v99
    %105 = vmatprep.subr.mxu0 0.0
    %106 = vmatpush1.msra.mxu0 %v98
    %107 = vmatprep.subr.mxu0 0.0
    %108 = vmatpush1.msra.mxu0 %v97
    %109 = vmatprep.subr.mxu0 0.0
    %110 = vmatpush1.msra.mxu0 %v96
    %111 = vmatprep.subr.mxu0 0.0
    %112 = vmatpush1.msra.mxu0 %v95
    %113 = vmatprep.subr.mxu0 0.0
    %114 = vmatpush1.msra.mxu0 %v94
    %115 = vmatprep.subr.mxu0 0.0
    %116 = vmatpush1.msra.mxu0 %v93
    %117 = vmatprep.subr.mxu0 0.0
    %118 = vmatpush1.msra.mxu0 %v92
    %119 = vmatprep.subr.mxu0 0.0
    %120 = vmatpush1.msra.mxu0 %v91
    %121 = vmatprep.subr.mxu0 0.0
    %122 = vmatpush1.msra.mxu0 %v90
    %123 = vmatprep.subr.mxu0 0.0
    %124 = vmatpush1.msra.mxu0 %v89
    %125 = vmatprep.subr.mxu0 0.0
    %126 = vmatpush1.msra.mxu0 %v88
    %127 = vmatprep.subr.mxu0 0.0
    %128 = vmatpush1.msra.mxu0 %v87
    %129 = vmatprep.subr.mxu0 0.0
    %130 = vmatpush1.msra.mxu0 %v86
    %131 = vmatprep.subr.mxu0 0.0
    %132 = vmatpush1.msra.mxu0 %v85
    %133 = vmatprep.subr.mxu0 0.0
    %134 = vmatpush2.msra.mxu0 0.0
    %135 = vmatprep.subr.mxu0 0.0
    %136 = vmatpush2.msra.mxu0 0.0
    %137 = vmatprep.subr.mxu0 0.0
    %138 = vmatpush2.msra.mxu0 0.0
    %139 = vmatprep.subr.mxu0 0.0
    %140 = vmatpush2.msra.mxu0 0.0
    %141 = vmatprep.subr.mxu0 0.0
    %142 = vmatpush2.msra.mxu0 0.0
    %143 = vmatprep.subr.mxu0 0.0
    %144 = vmatpush2.msra.mxu0 0.0
    %145 = vmatprep.subr.mxu0 0.0
    %146 = vmatpush2.msra.mxu0 0.0
    %147 = vmatprep.subr.mxu0 0.0
    %148 = vmatpush2.msra.mxu0 0.0
    %149 = vmatprep.subr.mxu0 0.0
    %150 = vmatpush2.msra.mxu0 0.0
    %151 = vmatprep.subr.mxu0 0.0
    %152 = vmatpush2.msra.mxu0 0.0
    %153 = vmatprep.subr.mxu0 0.0
    %154 = vmatpush2.msra.mxu0 0.0
    %155 = vmatprep.subr.mxu0 0.0
    %156 = vmatpush2.msra.mxu0 0.0
    %157 = vmatprep.subr.mxu0 0.0
    %158 = vmatpush2.msra.mxu0 0.0
    %159 = vmatprep.subr.mxu0 0.0
    %160 = vmatpush2.msra.mxu0 0.0
    %161 = vmatprep.subr.mxu0 0.0
    %162 = vmatpush2.msra.mxu0 0.0
    %163 = vmatprep.subr.mxu0 0.0
    %164 = vmatpush2.msra.mxu0 0.0
    %165 = vmatprep.mubr.f32.mxu0 0.0
    %166 = vmatmul.mubr.f32.gmra.mxu0 %v69
    %v167 = vpop.f32.mrf.mxu0
    %v168 = vadd.f32 0.0, %v167
    %v169 = vpop.f32.mrf.mxu0
    %170 = vmatprep.mubr.f32.mxu0 0.0
    %171 = vmatmul.mubr.f32.gmra.mxu0 %v70
    %v172 = vpop.f32.mrf.mxu0
    %v173 = vadd.f32 0.0, %v172
    %v174 = vpop.f32.mrf.mxu0
    %175 = vmatprep.mubr.f32.mxu0 0.0
    %176 = vmatmul.mubr.f32.gmra.mxu0 %v71
    %v177 = vpop.f32.mrf.mxu0
    %v178 = vadd.f32 0.0, %v177
    %v179 = vpop.f32.mrf.mxu0
    %180 = vmatprep.mubr.f32.mxu0 0.0
    %181 = vmatmul.mubr.f32.gmra.mxu0 %v72
    %v182 = vpop.f32.mrf.mxu0
    %v183 = vadd.f32 0.0, %v182
    %v184 = vpop.f32.mrf.mxu0
    %185 = vmatprep.mubr.f32.mxu0 0.0
    %186 = vmatmul.mubr.f32.gmra.mxu0 %v73
    %v187 = vpop.f32.mrf.mxu0
    %v188 = vadd.f32 0.0, %v187
    %v189 = vpop.f32.mrf.mxu0
    %190 = vmatprep.mubr.f32.mxu0 0.0
    %191 = vmatmul.mubr.f32.gmra.mxu0 %v74
    %v192 = vpop.f32.mrf.mxu0
    %v193 = vadd.f32 0.0, %v192
    %v194 = vpop.f32.mrf.mxu0
    %195 = vmatprep.mubr.f32.mxu0 0.0
    %196 = vmatmul.mubr.f32.gmra.mxu0 %v75
    %v197 = vpop.f32.mrf.mxu0
    %v198 = vadd.f32 0.0, %v197
    %v199 = vpop.f32.mrf.mxu0
    %200 = vmatprep.mubr.f32.mxu0 0.0
    %201 = vmatmul.mubr.f32.gmra.mxu0 %v76
    %v202 = vpop.f32.mrf.mxu0
    %v203 = vadd.f32 0.0, %v202
    %v204 = vpop.f32.mrf.mxu0
    %205 = vmatprep.mubr.f32.mxu0 0.0
    %206 = vmatmul.mubr.f32.gmra.mxu0 %v77
    %v207 = vpop.f32.mrf.mxu0
    %v208 = vadd.f32 0.0, %v207
    %v209 = vpop.f32.mrf.mxu0
    %210 = vmatprep.mubr.f32.mxu0 0.0
    %211 = vmatmul.mubr.f32.gmra.mxu0 %v78
    %v212 = vpop.f32.mrf.mxu0
    %v213 = vadd.f32 0.0, %v212
    %v214 = vpop.f32.mrf.mxu0
    %215 = vmatprep.mubr.f32.mxu0 0.0
    %216 = vmatmul.mubr.f32.gmra.mxu0 %v79
    %v217 = vpop.f32.mrf.mxu0
    %v218 = vadd.f32 0.0, %v217
    %v219 = vpop.f32.mrf.mxu0
    %220 = vmatprep.mubr.f32.mxu0 0.0
    %221 = vmatmul.mubr.f32.gmra.mxu0 %v80
    %v222 = vpop.f32.mrf.mxu0
    %v223 = vadd.f32 0.0, %v222
    %v224 = vpop.f32.mrf.mxu0
    %225 = vmatprep.mubr.f32.mxu0 0.0
    %226 = vmatmul.mubr.f32.gmra.mxu0 %v81
    %v227 = vpop.f32.mrf.mxu0
    %v228 = vadd.f32 0.0, %v227
    %v229 = vpop.f32.mrf.mxu0
    %230 = vmatprep.mubr.f32.mxu0 0.0
    %231 = vmatmul.mubr.f32.gmra.mxu0 %v82
    %v232 = vpop.f32.mrf.mxu0
    %v233 = vadd.f32 0.0, %v232
    %v234 = vpop.f32.mrf.mxu0
    %235 = vmatprep.mubr.f32.mxu0 0.0
    %236 = vmatmul.mubr.f32.gmra.mxu0 %v83
    %v237 = vpop.f32.mrf.mxu0
    %v238 = vadd.f32 0.0, %v237
    %v239 = vpop.f32.mrf.mxu0
    %240 = vmatprep.mubr.f32.mxu0 0.0
    %241 = vmatmul.mubr.f32.gmra.mxu0 %v84
    %v242 = vpop.f32.mrf.mxu0
    %v243 = vadd.f32 0.0, %v242
    %v244 = vpop.f32.mrf.mxu0
    %245 = vdwg.mxu0
    %v246 = vadd.f32 %v37, %v168
    %v247 = vadd.f32 %v38, %v173
    %v248 = vadd.f32 %v39, %v178
    %v249 = vadd.f32 %v40, %v183
    %v250 = vadd.f32 %v41, %v188
    %v251 = vadd.f32 %v42, %v193
    %v252 = vadd.f32 %v43, %v198
    %v253 = vadd.f32 %v44, %v203
    %v254 = vadd.f32 %v45, %v208
    %v255 = vadd.f32 %v46, %v213
    %v256 = vadd.f32 %v47, %v218
    %v257 = vadd.f32 %v48, %v223
    %v258 = vadd.f32 %v49, %v228
    %v259 = vadd.f32 %v50, %v233
    %v260 = vadd.f32 %v51, %v238
    %v261 = vadd.f32 %v52, %v243
    %262 = vst [vmem:[#allocation2] sm:$0xff] %v246
    %263 = vst [vmem:[#allocation2 + $0x8] sm:$0xff] %v247
    %264 = vst [vmem:[#allocation2 + $0x10] sm:$0xff] %v248
    %265 = vst [vmem:[#allocation2 + $0x18] sm:$0xff] %v249
    %266 = vst [vmem:[#allocation2 + $0x20] sm:$0xff] %v250
    %267 = vst [vmem:[#allocation2 + $0x28] sm:$0xff] %v251
    %268 = vst [vmem:[#allocation2 + $0x30] sm:$0xff] %v252
    %269 = vst [vmem:[#allocation2 + $0x38] sm:$0xff] %v253
    %270 = vst [vmem:[#allocation2 + $0x40] sm:$0xff] %v254
    %271 = vst [vmem:[#allocation2 + $0x48] sm:$0xff] %v255
    %272 = vst [vmem:[#allocation2 + $0x50] sm:$0xff] %v256
    %273 = vst [vmem:[#allocation2 + $0x58] sm:$0xff] %v257
    %274 = vst [vmem:[#allocation2 + $0x60] sm:$0xff] %v258
    %275 = vst [vmem:[#allocation2 + $0x68] sm:$0xff] %v259
    %276 = vst [vmem:[#allocation2 + $0x70] sm:$0xff] %v260
    %277 = vst [vmem:[#allocation2 + $0x78] sm:$0xff] %v261
    // Predicated region
    $region18: #{lightgcn_forward.5} parent=1 // pred_check
      %p278 = pneg %p17
    $region19: #{lightgcn_forward.5} parent=1 // pred_check_branch
      %280 = sbr.rel (%p278) target = $region21
    $region20: #{lightgcn_forward.5} parent=1 // pred_region
      %v281 = vld [vmem:[#allocation2] sm:$0xff]
      %v282 = vld [vmem:[#allocation2 + $0x8] sm:$0xff]
      %v283 = vld [vmem:[#allocation2 + $0x10] sm:$0xff]
      %v284 = vld [vmem:[#allocation2 + $0x18] sm:$0xff]
      %v285 = vld [vmem:[#allocation2 + $0x20] sm:$0xff]
      %v286 = vld [vmem:[#allocation2 + $0x28] sm:$0xff]
      %v287 = vld [vmem:[#allocation2 + $0x30] sm:$0xff]
      %v288 = vld [vmem:[#allocation2 + $0x38] sm:$0xff]
      %v289 = vld [vmem:[#allocation2 + $0x40] sm:$0xff]
      %v290 = vld [vmem:[#allocation2 + $0x48] sm:$0xff]
      %v291 = vld [vmem:[#allocation2 + $0x50] sm:$0xff]
      %v292 = vld [vmem:[#allocation2 + $0x58] sm:$0xff]
      %v293 = vld [vmem:[#allocation2 + $0x60] sm:$0xff]
      %v294 = vld [vmem:[#allocation2 + $0x68] sm:$0xff]
      %v295 = vld [vmem:[#allocation2 + $0x70] sm:$0xff]
      %v296 = vld [vmem:[#allocation2 + $0x78] sm:$0xff]
      %297 = vst [vmem:[#allocation3] sm:$0xff] %v281
      %298 = vst [vmem:[#allocation3 + $0x8] sm:$0xff] %v282
      %299 = vst [vmem:[#allocation3 + $0x10] sm:$0xff] %v283
      %300 = vst [vmem:[#allocation3 + $0x18] sm:$0xff] %v284
      %301 = vst [vmem:[#allocation3 + $0x20] sm:$0xff] %v285
      %302 = vst [vmem:[#allocation3 + $0x28] sm:$0xff] %v286
      %303 = vst [vmem:[#allocation3 + $0x30] sm:$0xff] %v287
      %304 = vst [vmem:[#allocation3 + $0x38] sm:$0xff] %v288
      %305 = vst [vmem:[#allocation3 + $0x40] sm:$0xff] %v289
      %306 = vst [vmem:[#allocation3 + $0x48] sm:$0xff] %v290
      %307 = vst [vmem:[#allocation3 + $0x50] sm:$0xff] %v291
      %308 = vst [vmem:[#allocation3 + $0x58] sm:$0xff] %v292
      %309 = vst [vmem:[#allocation3 + $0x60] sm:$0xff] %v293
      %310 = vst [vmem:[#allocation3 + $0x68] sm:$0xff] %v294
      %311 = vst [vmem:[#allocation3 + $0x70] sm:$0xff] %v295
      %312 = vst [vmem:[#allocation3 + $0x78] sm:$0xff] %v296
      %v313 = vld [vmem:[%s2] sm:$0xff]
      %v314 = vld [vmem:[%s2 + $0x8] sm:$0xff]
      %v315 = vld [vmem:[%s2 + $0x10] sm:$0xff]
      %v316 = vld [vmem:[%s2 + $0x18] sm:$0xff]
      %v317 = vld [vmem:[%s2 + $0x20] sm:$0xff]
      %v318 = vld [vmem:[%s2 + $0x28] sm:$0xff]
      %v319 = vld [vmem:[%s2 + $0x30] sm:$0xff]
      %v320 = vld [vmem:[%s2 + $0x38] sm:$0xff]
      %v321 = vld [vmem:[%s2 + $0x40] sm:$0xff]
      %v322 = vld [vmem:[%s2 + $0x48] sm:$0xff]
      %v323 = vld [vmem:[%s2 + $0x50] sm:$0xff]
      %v324 = vld [vmem:[%s2 + $0x58] sm:$0xff]
      %v325 = vld [vmem:[%s2 + $0x60] sm:$0xff]
      %v326 = vld [vmem:[%s2 + $0x68] sm:$0xff]
      %v327 = vld [vmem:[%s2 + $0x70] sm:$0xff]
      %v328 = vld [vmem:[%s2 + $0x78] sm:$0xff]
      %v329 = vadd.f32 %v313, %v281
      %v330 = vadd.f32 %v314, %v282
      %v331 = vadd.f32 %v315, %v283
      %v332 = vadd.f32 %v316, %v284
      %v333 = vadd.f32 %v317, %v285
      %v334 = vadd.f32 %v318, %v286
      %v335 = vadd.f32 %v319, %v287
      %v336 = vadd.f32 %v320, %v288
      %v337 = vadd.f32 %v321, %v289
      %v338 = vadd.f32 %v322, %v290
      %v339 = vadd.f32 %v323, %v291
      %v340 = vadd.f32 %v324, %v292
      %v341 = vadd.f32 %v325, %v293
      %v342 = vadd.f32 %v326, %v294
      %v343 = vadd.f32 %v327, %v295
      %v344 = vadd.f32 %v328, %v296
      %345 = vst [vmem:[%s4] sm:$0xff] %v329
      %346 = vst [vmem:[%s4 + $0x8] sm:$0xff] %v330
      %347 = vst [vmem:[%s4 + $0x10] sm:$0xff] %v331
      %348 = vst [vmem:[%s4 + $0x18] sm:$0xff] %v332
      %349 = vst [vmem:[%s4 + $0x20] sm:$0xff] %v333
      %350 = vst [vmem:[%s4 + $0x28] sm:$0xff] %v334
      %351 = vst [vmem:[%s4 + $0x30] sm:$0xff] %v335
      %352 = vst [vmem:[%s4 + $0x38] sm:$0xff] %v336
      %353 = vst [vmem:[%s4 + $0x40] sm:$0xff] %v337
      %354 = vst [vmem:[%s4 + $0x48] sm:$0xff] %v338
      %355 = vst [vmem:[%s4 + $0x50] sm:$0xff] %v339
      %356 = vst [vmem:[%s4 + $0x58] sm:$0xff] %v340
      %357 = vst [vmem:[%s4 + $0x60] sm:$0xff] %v341
      %358 = vst [vmem:[%s4 + $0x68] sm:$0xff] %v342
      %359 = vst [vmem:[%s4 + $0x70] sm:$0xff] %v343
      %360 = vst [vmem:[%s4 + $0x78] sm:$0xff] %v344
    $region21: #{lightgcn_forward.5} parent=1 // pred_fallthru
      _
    // Predicated region
    $region22: #{lightgcn_forward.5} parent=1 // pred_check
      _
    $region23: #{lightgcn_forward.5} parent=1 // pred_check_branch
      %362 = sbr.rel (0) target = $region25
    $region24: #{lightgcn_forward.5} parent=1 // pred_region
      %s364 = ssub.s32 2048, 2048
      %365 = vsyncadd [#allocation4], %s364
      %s366 = sshll.u32 [#allocation3], 4
      %s367 = int_to_ptr.vmem [resolvable:$true] %s366
      %372 = dma.vmem_to_hbm [thread:$0]  %s367, 2048, %s3, [#allocation4], 128, 128, 8
    $region25: #{lightgcn_forward.5} parent=1 // pred_fallthru
      _
    // Predicated region
    $region26: #{lightgcn_forward.5} parent=1 // pred_check
      _
    $region27: #{lightgcn_forward.5} parent=1 // pred_check_branch
      %374 = sbr.rel (0) target = $region29
    $region28: #{lightgcn_forward.5} parent=1 // pred_region
      _
    $region29: #{lightgcn_forward.5} parent=1 // pred_fallthru
      _
    // Predicated region
    $region30: #{lightgcn_forward.5} parent=1 // pred_check
      _
    $region31: #{lightgcn_forward.5} parent=1 // pred_check_branch
      %376 = sbr.rel (0) target = $region33
    $region32: #{lightgcn_forward.5} parent=1 // pred_region
      %377 = dma.done [#allocation4], 2048
    $region33: #{lightgcn_forward.5} parent=1 // pred_fallthru
      _
    // Predicated region
    $region34: #{lightgcn_forward.5} parent=1 // pred_check
      _
    $region35: #{lightgcn_forward.5} parent=1 // pred_check_branch
      %379 = sbr.rel (0) target = $region37
    $region36: #{lightgcn_forward.5} parent=1 // pred_region
      _
    $region37: #{lightgcn_forward.5} parent=1 // pred_fallthru
      _
    %380 = vsyncpa [#allocation4], 1

// kernel: lightgcn_forward.3
$region0: #{lightgcn_forward.3}
  #allocation0 [shape = 'u32[]', space=smem, size = 0x4, offset = 0x4, fixed_abs, tag = 'smem constant byte address 0x4 - core index']
  #allocation1 [shape = 'u32[144,128]{1,0:T(1,128)}', space=vmem, size = 0x12000, scoped, tag = 'internal scratch']
  #allocation2 [shape = 'f32[128,128]{1,0:T(8,128)}', space=vmem, size = 0x10000, scoped, tag = 'scratch operand']
  %s0 = inlined_call_operand.vmem [shape: bf16[128,128], index: 0, kind: input, shape index: {}]
  %s1 = inlined_call_operand.vmem [shape: f32[128,128], index: 1, kind: input, shape index: {}, may-alias: {1,2}]
  %s2 = inlined_call_operand.vmem [shape: f32[128,128], index: 2, kind: input, shape index: {}, may-alias: {1,2}]
  %s3 = inlined_call_operand.vmem [shape: f32[128,128], index: 3, kind: output, shape index: {0}]
  %s4 = inlined_call_operand.vmem [shape: f32[128,128], index: 4, kind: output, shape index: {1}]
  %5 = xla_tuple %s3, %s4
  %s6 = sld [smem:[#allocation0]]
  $region38: #{lightgcn_forward.3} parent=0
    _
  %s8 = ssub.s32 1, %s6
  %s9 = scalar_select 0, %s8, %s6
  // Predicated region
  $region2: #{lightgcn_forward.3} parent=0 // pred_check
    _
  $region3: #{lightgcn_forward.3} parent=0 // pred_check_branch
    %11 = sbr.rel (0) target = $region5
  $region4: #{lightgcn_forward.3} parent=0 // pred_region
    _
  $region5: #{lightgcn_forward.3} parent=0 // pred_fallthru
    _
  // Predicated region
  $region6: #{lightgcn_forward.3} parent=0 // pred_check
    _
  $region7: #{lightgcn_forward.3} parent=0 // pred_check_branch
    %13 = sbr.rel (0) target = $region9
  $region8: #{lightgcn_forward.3} parent=0 // pred_region
    _
  $region9: #{lightgcn_forward.3} parent=0 // pred_fallthru
    _
  // Predicated region
  $region10: #{lightgcn_forward.3} parent=0 // pred_check
    _
  $region11: #{lightgcn_forward.3} parent=0 // pred_check_branch
    %15 = sbr.rel (0) target = $region13
  $region12: #{lightgcn_forward.3} parent=0 // pred_region
    _
  $region13: #{lightgcn_forward.3} parent=0 // pred_fallthru
    _
  %p16 = scmp.eq.s32.totalorder 0, 0
  // Predicated region
  $region14: #{lightgcn_forward.3} parent=0 // pred_check
    %p17 = pneg %p16
  $region15: #{lightgcn_forward.3} parent=0 // pred_check_branch
    %19 = sbr.rel (%p17) target = $region17
  $region16: #{lightgcn_forward.3} parent=0 // pred_region
    %20 = vst [vmem:[#allocation2] sm:$0xff] 0.0
    %21 = vst [vmem:[#allocation2 + $0x8] sm:$0xff] 0.0
    %22 = vst [vmem:[#allocation2 + $0x10] sm:$0xff] 0.0
    %23 = vst [vmem:[#allocation2 + $0x18] sm:$0xff] 0.0
    %24 = vst [vmem:[#allocation2 + $0x20] sm:$0xff] 0.0
    %25 = vst [vmem:[#allocation2 + $0x28] sm:$0xff] 0.0
    %26 = vst [vmem:[#allocation2 + $0x30] sm:$0xff] 0.0
    %27 = vst [vmem:[#allocation2 + $0x38] sm:$0xff] 0.0
    %28 = vst [vmem:[#allocation2 + $0x40] sm:$0xff] 0.0
    %29 = vst [vmem:[#allocation2 + $0x48] sm:$0xff] 0.0
    %30 = vst [vmem:[#allocation2 + $0x50] sm:$0xff] 0.0
    %31 = vst [vmem:[#allocation2 + $0x58] sm:$0xff] 0.0
    %32 = vst [vmem:[#allocation2 + $0x60] sm:$0xff] 0.0
    %33 = vst [vmem:[#allocation2 + $0x68] sm:$0xff] 0.0
    %34 = vst [vmem:[#allocation2 + $0x70] sm:$0xff] 0.0
    %35 = vst [vmem:[#allocation2 + $0x78] sm:$0xff] 0.0
  $region17: #{lightgcn_forward.3} parent=0 // pred_fallthru
    _
  %v36 = vld [vmem:[#allocation2] sm:$0xff]
  %v37 = vld [vmem:[#allocation2 + $0x8] sm:$0xff]
  %v38 = vld [vmem:[#allocation2 + $0x10] sm:$0xff]
  %v39 = vld [vmem:[#allocation2 + $0x18] sm:$0xff]
  %v40 = vld [vmem:[#allocation2 + $0x20] sm:$0xff]
  %v41 = vld [vmem:[#allocation2 + $0x28] sm:$0xff]
  %v42 = vld [vmem:[#allocation2 + $0x30] sm:$0xff]
  %v43 = vld [vmem:[#allocation2 + $0x38] sm:$0xff]
  %v44 = vld [vmem:[#allocation2 + $0x40] sm:$0xff]
  %v45 = vld [vmem:[#allocation2 + $0x48] sm:$0xff]
  %v46 = vld [vmem:[#allocation2 + $0x50] sm:$0xff]
  %v47 = vld [vmem:[#allocation2 + $0x58] sm:$0xff]
  %v48 = vld [vmem:[#allocation2 + $0x60] sm:$0xff]
  %v49 = vld [vmem:[#allocation2 + $0x68] sm:$0xff]
  %v50 = vld [vmem:[#allocation2 + $0x70] sm:$0xff]
  %v51 = vld [vmem:[#allocation2 + $0x78] sm:$0xff]
  %v52 = vld [vmem:[%s0] sm:$0xf]
  %v53 = vld [vmem:[%s0 + $0x4] sm:$0xf]
  %v54 = vld [vmem:[%s0 + $0x8] sm:$0xf]
  %v55 = vld [vmem:[%s0 + $0xc] sm:$0xf]
  %v56 = vld [vmem:[%s0 + $0x10] sm:$0xf]
  %v57 = vld [vmem:[%s0 + $0x14] sm:$0xf]
  %v58 = vld [vmem:[%s0 + $0x18] sm:$0xf]
  %v59 = vld [vmem:[%s0 + $0x1c] sm:$0xf]
  %v60 = vld [vmem:[%s0 + $0x20] sm:$0xf]
  %v61 = vld [vmem:[%s0 + $0x24] sm:$0xf]
  %v62 = vld [vmem:[%s0 + $0x28] sm:$0xf]
  %v63 = vld [vmem:[%s0 + $0x2c] sm:$0xf]
  %v64 = vld [vmem:[%s0 + $0x30] sm:$0xf]
  %v65 = vld [vmem:[%s0 + $0x34] sm:$0xf]
  %v66 = vld [vmem:[%s0 + $0x38] sm:$0xf]
  %v67 = vld [vmem:[%s0 + $0x3c] sm:$0xf]
  %v68 = vunpack.c.l.bf16 %v52
  %v69 = vunpack.c.l.bf16 %v53
  %v70 = vunpack.c.l.bf16 %v54
  %v71 = vunpack.c.l.bf16 %v55
  %v72 = vunpack.c.l.bf16 %v56
  %v73 = vunpack.c.l.bf16 %v57
  %v74 = vunpack.c.l.bf16 %v58
  %v75 = vunpack.c.l.bf16 %v59
  %v76 = vunpack.c.l.bf16 %v60
  %v77 = vunpack.c.l.bf16 %v61
  %v78 = vunpack.c.l.bf16 %v62
  %v79 = vunpack.c.l.bf16 %v63
  %v80 = vunpack.c.l.bf16 %v64
  %v81 = vunpack.c.l.bf16 %v65
  %v82 = vunpack.c.l.bf16 %v66
  %v83 = vunpack.c.l.bf16 %v67
  %v84 = vld [vmem:[%s1] sm:$0xff]
  %v85 = vld [vmem:[%s1 + $0x8] sm:$0xff]
  %v86 = vld [vmem:[%s1 + $0x10] sm:$0xff]
  %v87 = vld [vmem:[%s1 + $0x18] sm:$0xff]
  %v88 = vld [vmem:[%s1 + $0x20] sm:$0xff]
  %v89 = vld [vmem:[%s1 + $0x28] sm:$0xff]
  %v90 = vld [vmem:[%s1 + $0x30] sm:$0xff]
  %v91 = vld [vmem:[%s1 + $0x38] sm:$0xff]
  %v92 = vld [vmem:[%s1 + $0x40] sm:$0xff]
  %v93 = vld [vmem:[%s1 + $0x48] sm:$0xff]
  %v94 = vld [vmem:[%s1 + $0x50] sm:$0xff]
  %v95 = vld [vmem:[%s1 + $0x58] sm:$0xff]
  %v96 = vld [vmem:[%s1 + $0x60] sm:$0xff]
  %v97 = vld [vmem:[%s1 + $0x68] sm:$0xff]
  %v98 = vld [vmem:[%s1 + $0x70] sm:$0xff]
  %v99 = vld [vmem:[%s1 + $0x78] sm:$0xff]
  %100 = vmatprep.subr.mxu0 0.0
  %101 = vmatpush1.msra.mxu0 %v99
  %102 = vmatprep.subr.mxu0 0.0
  %103 = vmatpush1.msra.mxu0 %v98
  %104 = vmatprep.subr.mxu0 0.0
  %105 = vmatpush1.msra.mxu0 %v97
  %106 = vmatprep.subr.mxu0 0.0
  %107 = vmatpush1.msra.mxu0 %v96
  %108 = vmatprep.subr.mxu0 0.0
  %109 = vmatpush1.msra.mxu0 %v95
  %110 = vmatprep.subr.mxu0 0.0
  %111 = vmatpush1.msra.mxu0 %v94
  %112 = vmatprep.subr.mxu0 0.0
  %113 = vmatpush1.msra.mxu0 %v93
  %114 = vmatprep.subr.mxu0 0.0
  %115 = vmatpush1.msra.mxu0 %v92
  %116 = vmatprep.subr.mxu0 0.0
  %117 = vmatpush1.msra.mxu0 %v91
  %118 = vmatprep.subr.mxu0 0.0
  %119 = vmatpush1.msra.mxu0 %v90
  %120 = vmatprep.subr.mxu0 0.0
  %121 = vmatpush1.msra.mxu0 %v89
  %122 = vmatprep.subr.mxu0 0.0
  %123 = vmatpush1.msra.mxu0 %v88
  %124 = vmatprep.subr.mxu0 0.0
  %125 = vmatpush1.msra.mxu0 %v87
  %126 = vmatprep.subr.mxu0 0.0
  %127 = vmatpush1.msra.mxu0 %v86
  %128 = vmatprep.subr.mxu0 0.0
  %129 = vmatpush1.msra.mxu0 %v85
  %130 = vmatprep.subr.mxu0 0.0
  %131 = vmatpush1.msra.mxu0 %v84
  %132 = vmatprep.subr.mxu0 0.0
  %133 = vmatpush2.msra.mxu0 0.0
  %134 = vmatprep.subr.mxu0 0.0
  %135 = vmatpush2.msra.mxu0 0.0
  %136 = vmatprep.subr.mxu0 0.0
  %137 = vmatpush2.msra.mxu0 0.0
  %138 = vmatprep.subr.mxu0 0.0
  %139 = vmatpush2.msra.mxu0 0.0
  %140 = vmatprep.subr.mxu0 0.0
  %141 = vmatpush2.msra.mxu0 0.0
  %142 = vmatprep.subr.mxu0 0.0
  %143 = vmatpush2.msra.mxu0 0.0
  %144 = vmatprep.subr.mxu0 0.0
  %145 = vmatpush2.msra.mxu0 0.0
  %146 = vmatprep.subr.mxu0 0.0
  %147 = vmatpush2.msra.mxu0 0.0
  %148 = vmatprep.subr.mxu0 0.0
  %149 = vmatpush2.msra.mxu0 0.0
  %150 = vmatprep.subr.mxu0 0.0
  %151 = vmatpush2.msra.mxu0 0.0
  %152 = vmatprep.subr.mxu0 0.0
  %153 = vmatpush2.msra.mxu0 0.0
  %154 = vmatprep.subr.mxu0 0.0
  %155 = vmatpush2.msra.mxu0 0.0
  %156 = vmatprep.subr.mxu0 0.0
  %157 = vmatpush2.msra.mxu0 0.0
  %158 = vmatprep.subr.mxu0 0.0
  %159 = vmatpush2.msra.mxu0 0.0
  %160 = vmatprep.subr.mxu0 0.0
  %161 = vmatpush2.msra.mxu0 0.0
  %162 = vmatprep.subr.mxu0 0.0
  %163 = vmatpush2.msra.mxu0 0.0
  %164 = vmatprep.mubr.f32.mxu0 0.0
  %165 = vmatmul.mubr.f32.gmra.mxu0 %v68
  %v166 = vpop.f32.mrf.mxu0
  %v167 = vadd.f32 0.0, %v166
  %v168 = vpop.f32.mrf.mxu0
  %169 = vmatprep.mubr.f32.mxu0 0.0
  %170 = vmatmul.mubr.f32.gmra.mxu0 %v69
  %v171 = vpop.f32.mrf.mxu0
  %v172 = vadd.f32 0.0, %v171
  %v173 = vpop.f32.mrf.mxu0
  %174 = vmatprep.mubr.f32.mxu0 0.0
  %175 = vmatmul.mubr.f32.gmra.mxu0 %v70
  %v176 = vpop.f32.mrf.mxu0
  %v177 = vadd.f32 0.0, %v176
  %v178 = vpop.f32.mrf.mxu0
  %179 = vmatprep.mubr.f32.mxu0 0.0
  %180 = vmatmul.mubr.f32.gmra.mxu0 %v71
  %v181 = vpop.f32.mrf.mxu0
  %v182 = vadd.f32 0.0, %v181
  %v183 = vpop.f32.mrf.mxu0
  %184 = vmatprep.mubr.f32.mxu0 0.0
  %185 = vmatmul.mubr.f32.gmra.mxu0 %v72
  %v186 = vpop.f32.mrf.mxu0
  %v187 = vadd.f32 0.0, %v186
  %v188 = vpop.f32.mrf.mxu0
  %189 = vmatprep.mubr.f32.mxu0 0.0
  %190 = vmatmul.mubr.f32.gmra.mxu0 %v73
  %v191 = vpop.f32.mrf.mxu0
  %v192 = vadd.f32 0.0, %v191
  %v193 = vpop.f32.mrf.mxu0
  %194 = vmatprep.mubr.f32.mxu0 0.0
  %195 = vmatmul.mubr.f32.gmra.mxu0 %v74
  %v196 = vpop.f32.mrf.mxu0
  %v197 = vadd.f32 0.0, %v196
  %v198 = vpop.f32.mrf.mxu0
  %199 = vmatprep.mubr.f32.mxu0 0.0
  %200 = vmatmul.mubr.f32.gmra.mxu0 %v75
  %v201 = vpop.f32.mrf.mxu0
  %v202 = vadd.f32 0.0, %v201
  %v203 = vpop.f32.mrf.mxu0
  %204 = vmatprep.mubr.f32.mxu0 0.0
  %205 = vmatmul.mubr.f32.gmra.mxu0 %v76
  %v206 = vpop.f32.mrf.mxu0
  %v207 = vadd.f32 0.0, %v206
  %v208 = vpop.f32.mrf.mxu0
  %209 = vmatprep.mubr.f32.mxu0 0.0
  %210 = vmatmul.mubr.f32.gmra.mxu0 %v77
  %v211 = vpop.f32.mrf.mxu0
  %v212 = vadd.f32 0.0, %v211
  %v213 = vpop.f32.mrf.mxu0
  %214 = vmatprep.mubr.f32.mxu0 0.0
  %215 = vmatmul.mubr.f32.gmra.mxu0 %v78
  %v216 = vpop.f32.mrf.mxu0
  %v217 = vadd.f32 0.0, %v216
  %v218 = vpop.f32.mrf.mxu0
  %219 = vmatprep.mubr.f32.mxu0 0.0
  %220 = vmatmul.mubr.f32.gmra.mxu0 %v79
  %v221 = vpop.f32.mrf.mxu0
  %v222 = vadd.f32 0.0, %v221
  %v223 = vpop.f32.mrf.mxu0
  %224 = vmatprep.mubr.f32.mxu0 0.0
  %225 = vmatmul.mubr.f32.gmra.mxu0 %v80
  %v226 = vpop.f32.mrf.mxu0
  %v227 = vadd.f32 0.0, %v226
  %v228 = vpop.f32.mrf.mxu0
  %229 = vmatprep.mubr.f32.mxu0 0.0
  %230 = vmatmul.mubr.f32.gmra.mxu0 %v81
  %v231 = vpop.f32.mrf.mxu0
  %v232 = vadd.f32 0.0, %v231
  %v233 = vpop.f32.mrf.mxu0
  %234 = vmatprep.mubr.f32.mxu0 0.0
  %235 = vmatmul.mubr.f32.gmra.mxu0 %v82
  %v236 = vpop.f32.mrf.mxu0
  %v237 = vadd.f32 0.0, %v236
  %v238 = vpop.f32.mrf.mxu0
  %239 = vmatprep.mubr.f32.mxu0 0.0
  %240 = vmatmul.mubr.f32.gmra.mxu0 %v83
  %v241 = vpop.f32.mrf.mxu0
  %v242 = vadd.f32 0.0, %v241
  %v243 = vpop.f32.mrf.mxu0
  %244 = vdwg.mxu0
  %v245 = vadd.f32 %v36, %v167
  %v246 = vadd.f32 %v37, %v172
  %v247 = vadd.f32 %v38, %v177
  %v248 = vadd.f32 %v39, %v182
  %v249 = vadd.f32 %v40, %v187
  %v250 = vadd.f32 %v41, %v192
  %v251 = vadd.f32 %v42, %v197
  %v252 = vadd.f32 %v43, %v202
  %v253 = vadd.f32 %v44, %v207
  %v254 = vadd.f32 %v45, %v212
  %v255 = vadd.f32 %v46, %v217
  %v256 = vadd.f32 %v47, %v222
  %v257 = vadd.f32 %v48, %v227
  %v258 = vadd.f32 %v49, %v232
  %v259 = vadd.f32 %v50, %v237
  %v260 = vadd.f32 %v51, %v242
  %261 = vst [vmem:[#allocation2] sm:$0xff] %v245
  %262 = vst [vmem:[#allocation2 + $0x8] sm:$0xff] %v246
  %263 = vst [vmem:[#allocation2 + $0x10] sm:$0xff] %v247
  %264 = vst [vmem:[#allocation2 + $0x18] sm:$0xff] %v248
  %265 = vst [vmem:[#allocation2 + $0x20] sm:$0xff] %v249
  %266 = vst [vmem:[#allocation2 + $0x28] sm:$0xff] %v250
  %267 = vst [vmem:[#allocation2 + $0x30] sm:$0xff] %v251
  %268 = vst [vmem:[#allocation2 + $0x38] sm:$0xff] %v252
  %269 = vst [vmem:[#allocation2 + $0x40] sm:$0xff] %v253
  %270 = vst [vmem:[#allocation2 + $0x48] sm:$0xff] %v254
  %271 = vst [vmem:[#allocation2 + $0x50] sm:$0xff] %v255
  %272 = vst [vmem:[#allocation2 + $0x58] sm:$0xff] %v256
  %273 = vst [vmem:[#allocation2 + $0x60] sm:$0xff] %v257
  %274 = vst [vmem:[#allocation2 + $0x68] sm:$0xff] %v258
  %275 = vst [vmem:[#allocation2 + $0x70] sm:$0xff] %v259
  %276 = vst [vmem:[#allocation2 + $0x78] sm:$0xff] %v260
  // Predicated region
  $region18: #{lightgcn_forward.3} parent=0 // pred_check
    %p277 = pneg %p16
  $region19: #{lightgcn_forward.3} parent=0 // pred_check_branch
    %279 = sbr.rel (%p277) target = $region21
  $region20: #{lightgcn_forward.3} parent=0 // pred_region
    %v280 = vld [vmem:[#allocation2] sm:$0xff]
    %v281 = vld [vmem:[#allocation2 + $0x8] sm:$0xff]
    %v282 = vld [vmem:[#allocation2 + $0x10] sm:$0xff]
    %v283 = vld [vmem:[#allocation2 + $0x18] sm:$0xff]
    %v284 = vld [vmem:[#allocation2 + $0x20] sm:$0xff]
    %v285 = vld [vmem:[#allocation2 + $0x28] sm:$0xff]
    %v286 = vld [vmem:[#allocation2 + $0x30] sm:$0xff]
    %v287 = vld [vmem:[#allocation2 + $0x38] sm:$0xff]
    %v288 = vld [vmem:[#allocation2 + $0x40] sm:$0xff]
    %v289 = vld [vmem:[#allocation2 + $0x48] sm:$0xff]
    %v290 = vld [vmem:[#allocation2 + $0x50] sm:$0xff]
    %v291 = vld [vmem:[#allocation2 + $0x58] sm:$0xff]
    %v292 = vld [vmem:[#allocation2 + $0x60] sm:$0xff]
    %v293 = vld [vmem:[#allocation2 + $0x68] sm:$0xff]
    %v294 = vld [vmem:[#allocation2 + $0x70] sm:$0xff]
    %v295 = vld [vmem:[#allocation2 + $0x78] sm:$0xff]
    %296 = vst [vmem:[%s3] sm:$0xff] %v280
    %297 = vst [vmem:[%s3 + $0x8] sm:$0xff] %v281
    %298 = vst [vmem:[%s3 + $0x10] sm:$0xff] %v282
    %299 = vst [vmem:[%s3 + $0x18] sm:$0xff] %v283
    %300 = vst [vmem:[%s3 + $0x20] sm:$0xff] %v284
    %301 = vst [vmem:[%s3 + $0x28] sm:$0xff] %v285
    %302 = vst [vmem:[%s3 + $0x30] sm:$0xff] %v286
    %303 = vst [vmem:[%s3 + $0x38] sm:$0xff] %v287
    %304 = vst [vmem:[%s3 + $0x40] sm:$0xff] %v288
    %305 = vst [vmem:[%s3 + $0x48] sm:$0xff] %v289
    %306 = vst [vmem:[%s3 + $0x50] sm:$0xff] %v290
    %307 = vst [vmem:[%s3 + $0x58] sm:$0xff] %v291
    %308 = vst [vmem:[%s3 + $0x60] sm:$0xff] %v292
    %309 = vst [vmem:[%s3 + $0x68] sm:$0xff] %v293
    %310 = vst [vmem:[%s3 + $0x70] sm:$0xff] %v294
    %311 = vst [vmem:[%s3 + $0x78] sm:$0xff] %v295
    %v312 = vld [vmem:[%s2] sm:$0xff]
    %v313 = vld [vmem:[%s2 + $0x8] sm:$0xff]
    %v314 = vld [vmem:[%s2 + $0x10] sm:$0xff]
    %v315 = vld [vmem:[%s2 + $0x18] sm:$0xff]
    %v316 = vld [vmem:[%s2 + $0x20] sm:$0xff]
    %v317 = vld [vmem:[%s2 + $0x28] sm:$0xff]
    %v318 = vld [vmem:[%s2 + $0x30] sm:$0xff]
    %v319 = vld [vmem:[%s2 + $0x38] sm:$0xff]
    %v320 = vld [vmem:[%s2 + $0x40] sm:$0xff]
    %v321 = vld [vmem:[%s2 + $0x48] sm:$0xff]
    %v322 = vld [vmem:[%s2 + $0x50] sm:$0xff]
    %v323 = vld [vmem:[%s2 + $0x58] sm:$0xff]
    %v324 = vld [vmem:[%s2 + $0x60] sm:$0xff]
    %v325 = vld [vmem:[%s2 + $0x68] sm:$0xff]
    %v326 = vld [vmem:[%s2 + $0x70] sm:$0xff]
    %v327 = vld [vmem:[%s2 + $0x78] sm:$0xff]
    %v328 = vadd.f32 %v312, %v280
    %v329 = vadd.f32 %v313, %v281
    %v330 = vadd.f32 %v314, %v282
    %v331 = vadd.f32 %v315, %v283
    %v332 = vadd.f32 %v316, %v284
    %v333 = vadd.f32 %v317, %v285
    %v334 = vadd.f32 %v318, %v286
    %v335 = vadd.f32 %v319, %v287
    %v336 = vadd.f32 %v320, %v288
    %v337 = vadd.f32 %v321, %v289
    %v338 = vadd.f32 %v322, %v290
    %v339 = vadd.f32 %v323, %v291
    %v340 = vadd.f32 %v324, %v292
    %v341 = vadd.f32 %v325, %v293
    %v342 = vadd.f32 %v326, %v294
    %v343 = vadd.f32 %v327, %v295
    %344 = vst [vmem:[%s4] sm:$0xff] %v328
    %345 = vst [vmem:[%s4 + $0x8] sm:$0xff] %v329
    %346 = vst [vmem:[%s4 + $0x10] sm:$0xff] %v330
    %347 = vst [vmem:[%s4 + $0x18] sm:$0xff] %v331
    %348 = vst [vmem:[%s4 + $0x20] sm:$0xff] %v332
    %349 = vst [vmem:[%s4 + $0x28] sm:$0xff] %v333
    %350 = vst [vmem:[%s4 + $0x30] sm:$0xff] %v334
    %351 = vst [vmem:[%s4 + $0x38] sm:$0xff] %v335
    %352 = vst [vmem:[%s4 + $0x40] sm:$0xff] %v336
    %353 = vst [vmem:[%s4 + $0x48] sm:$0xff] %v337
    %354 = vst [vmem:[%s4 + $0x50] sm:$0xff] %v338
    %355 = vst [vmem:[%s4 + $0x58] sm:$0xff] %v339
    %356 = vst [vmem:[%s4 + $0x60] sm:$0xff] %v340
    %357 = vst [vmem:[%s4 + $0x68] sm:$0xff] %v341
    %358 = vst [vmem:[%s4 + $0x70] sm:$0xff] %v342
    %359 = vst [vmem:[%s4 + $0x78] sm:$0xff] %v343
  $region21: #{lightgcn_forward.3} parent=0 // pred_fallthru
    _
  // Predicated region
  $region22: #{lightgcn_forward.3} parent=0 // pred_check
    _
  $region23: #{lightgcn_forward.3} parent=0 // pred_check_branch
    %361 = sbr.rel (0) target = $region25
  $region24: #{lightgcn_forward.3} parent=0 // pred_region
    _
  $region25: #{lightgcn_forward.3} parent=0 // pred_fallthru
    _
  // Predicated region
  $region26: #{lightgcn_forward.3} parent=0 // pred_check
    _
  $region27: #{lightgcn_forward.3} parent=0 // pred_check_branch
    %363 = sbr.rel (0) target = $region29
  $region28: #{lightgcn_forward.3} parent=0 // pred_region
    _
  $region29: #{lightgcn_forward.3} parent=0 // pred_fallthru
    _
  // Predicated region
  $region30: #{lightgcn_forward.3} parent=0 // pred_check
    _
  $region31: #{lightgcn_forward.3} parent=0 // pred_check_branch
    %365 = sbr.rel (0) target = $region33
  $region32: #{lightgcn_forward.3} parent=0 // pred_region
    _
  $region33: #{lightgcn_forward.3} parent=0 // pred_fallthru
    _
  // Predicated region
  $region34: #{lightgcn_forward.3} parent=0 // pred_check
    _
  $region35: #{lightgcn_forward.3} parent=0 // pred_check_branch
    %367 = sbr.rel (0) target = $region37
  $region36: #{lightgcn_forward.3} parent=0 // pred_region
    _
  $region37: #{lightgcn_forward.3} parent=0 // pred_fallthru
    _

</llo_original>
